<compile_context>
chip_gen: v7x
topology: tpu7x:2x2x1
jax: 0.10.0
libtpu: 0.0.40
codegen_flags: <defaults>
</compile_context>

<pallas_src>
import jax
import jax.numpy as jnp
from jax import lax
from jax.experimental import pallas as pl
from jax.experimental.pallas import tpu as pltpu


_TRANS_B = (((1,), (1,)), ((), ()))  # contract the last dim of both operands


def mlp_kernel(x_ref, w1_ref, b1_ref, w2_ref, b2_ref, w3_ref, b3_ref,
               w4_ref, b4_ref, o_ref):
    # Layer 1: (32, F) . (TILE_B, F)^T -> (32, TILE_B).  Batch lives on lanes
    # from here on, so all intermediates and the output are lane-dense.
    h = lax.dot_general(w1_ref[...], x_ref[...], _TRANS_B,
                        preferred_element_type=jnp.float32)
    h = jnp.maximum(h + b1_ref[...], 0.0)
    # Layers 2 / 3: (32, 32) @ (32, TILE_B) + bias + ReLU.
    h = jnp.maximum(jnp.dot(w2_ref[...], h, preferred_element_type=jnp.float32)
                    + b2_ref[...], 0.0)
    h = jnp.maximum(jnp.dot(w3_ref[...], h, preferred_element_type=jnp.float32)
                    + b3_ref[...], 0.0)
    # Predict: (1, 32) @ (32, TILE_B) -> (1, TILE_B); unmasked lane-dense store.
    o_ref[...] = (jnp.dot(w4_ref[...], h, preferred_element_type=jnp.float32)
                  + b4_ref[...])


def _round_up(n, m):
    return ((n + m - 1) // m) * m


def mlp_forward(x, params, *, tile_b=8192):
    """x: (B, first_layer) float32. Returns (B,) — matches torch output[:, 0]."""
    (w1, b1), (w2, b2), (w3, b3), (w4, b4) = params
    B, F = x.shape

    # Large tile to amortize per-grid-step overhead; shrink for tiny batches.
    tile_b = min(tile_b, _round_up(B, 128))
    b_pad = _round_up(B, tile_b)
    if b_pad != B:
        x = jnp.pad(x, ((0, b_pad - B), (0, 0)))
    grid = (b_pad // tile_b,)

    weights = (w1, b1, w2, b2, w3, b3, w4, b4)
    # Weights/biases: full-array blocks with constant index maps -> DMA'd once,
    # then VMEM-resident across all grid steps.
    const_specs = [pl.BlockSpec(a.shape, lambda i: (0, 0)) for a in weights]
    param_bytes = sum(a.size * a.dtype.itemsize for a in weights)

    cost = pl.CostEstimate(
        flops=2 * b_pad * (F * 32 + 32 * 32 + 32 * 32 + 32),
        transcendentals=0,
        bytes_accessed=b_pad * (F + 1) * 4 + param_bytes,
    )

    out = pl.pallas_call(
        mlp_kernel,
        out_shape=jax.ShapeDtypeStruct((1, b_pad), jnp.float32),
        grid=grid,
        in_specs=[pl.BlockSpec((tile_b, F), lambda i: (i, 0))] + const_specs,
        out_specs=pl.BlockSpec((1, tile_b), lambda i: (0, i)),
        compiler_params=pltpu.CompilerParams(
            dimension_semantics=("parallel",)),
        cost_estimate=cost,
    )(x, *weights)
    return out[0, :B]


def init_params(key, first_layer=14):
    """torch.nn.Linear-style init. Weights in (out, in) layout, biases (out, 1)."""
    dims = [(first_layer, 32), (32, 32), (32, 32), (32, 1)]
    params = []
    for i, (din, dout) in enumerate(dims):
        kw, kb = jax.random.split(jax.random.fold_in(key, i))
        bound = 1.0 / (din ** 0.5)  # mimic torch.nn.Linear uniform bound
        w = jax.random.uniform(kw, (dout, din), jnp.float32, -bound, bound)
        b = jax.random.uniform(kb, (dout, 1), jnp.float32, -bound, bound)
        params.append((w, b))
    return params


def mlp_reference(x, params):
    (w1, b1), (w2, b2), (w3, b3), (w4, b4) = params
    h = jnp.maximum(x @ w1.T + b1[:, 0], 0.0)
    h = jnp.maximum(h @ w2.T + b2[:, 0], 0.0)
    h = jnp.maximum(h @ w3.T + b3[:, 0], 0.0)
    return (h @ w4.T + b4[:, 0])[:, 0]


if __name__ == "__main__":
    key = jax.random.PRNGKey(0)
    k_x, k_p = jax.random.split(key)

    first_layer = 14
    batch = 8
    x = jax.random.normal(k_x, (batch, first_layer), jnp.float32)
    params = init_params(k_p, first_layer)

    out = jax.block_until_ready(mlp_forward(x, params))

    ref = mlp_reference(x, params)
    assert out.shape == (batch,)
    assert jnp.allclose(out, ref, atol=1e-5, rtol=1e-5), float(
        jnp.max(jnp.abs(out - ref)))

    print("KERNEL_OK")
</pallas_src>

<mosaic_0001>
module attributes {stable_mosaic.version = 11 : i64} {
  func.func @mlp_kernel(%arg0: i32, %arg1: memref<128x14xf32, #tpu.memory_space<vmem>>, %arg2: memref<32x14xf32, #tpu.memory_space<vmem>>, %arg3: memref<32x1xf32, #tpu.memory_space<vmem>>, %arg4: memref<32x32xf32, #tpu.memory_space<vmem>>, %arg5: memref<32x1xf32, #tpu.memory_space<vmem>>, %arg6: memref<32x32xf32, #tpu.memory_space<vmem>>, %arg7: memref<32x1xf32, #tpu.memory_space<vmem>>, %arg8: memref<1x32xf32, #tpu.memory_space<vmem>>, %arg9: memref<1x1xf32, #tpu.memory_space<vmem>>, %arg10: memref<1x128xf32, #tpu.memory_space<vmem>>) attributes {dimension_semantics = [#tpu.dimension_semantics<parallel>], iteration_bounds = array<i64: 1>, scalar_prefetch = 0 : i64, scratch_operands = 0 : i64, tpu.core_type = #tpu.core_type<tc>, window_params = [{transform_indices = @transform_0, window_bounds = array<i64: 128, 14>}, {pipeline_mode = #tpu.pipeline_mode<synchronous>, transform_indices = @transform_1, window_bounds = array<i64: 32, 14>}, {pipeline_mode = #tpu.pipeline_mode<synchronous>, transform_indices = @transform_2, window_bounds = array<i64: 32, 1>}, {pipeline_mode = #tpu.pipeline_mode<synchronous>, transform_indices = @transform_3, window_bounds = array<i64: 32, 32>}, {pipeline_mode = #tpu.pipeline_mode<synchronous>, transform_indices = @transform_4, window_bounds = array<i64: 32, 1>}, {pipeline_mode = #tpu.pipeline_mode<synchronous>, transform_indices = @transform_5, window_bounds = array<i64: 32, 32>}, {pipeline_mode = #tpu.pipeline_mode<synchronous>, transform_indices = @transform_6, window_bounds = array<i64: 32, 1>}, {pipeline_mode = #tpu.pipeline_mode<synchronous>, transform_indices = @transform_7, window_bounds = array<i64: 1, 32>}, {pipeline_mode = #tpu.pipeline_mode<synchronous>, transform_indices = @transform_8, window_bounds = array<i64: 1, 1>}, {transform_indices = @transform_9, window_bounds = array<i64: 1, 128>}]} {
    %c0 = arith.constant 0 : index
    %c0_0 = arith.constant 0 : index
    %0 = vector.load %arg2[%c0, %c0_0] : memref<32x14xf32, #tpu.memory_space<vmem>>, vector<32x14xf32>
    %c0_1 = arith.constant 0 : index
    %c0_2 = arith.constant 0 : index
    %1 = vector.load %arg1[%c0_1, %c0_2] : memref<128x14xf32, #tpu.memory_space<vmem>>, vector<128x14xf32>
    %cst = arith.constant dense<0.000000e+00> : vector<32x128xf32>
    %2 = tpu.matmul %0, %1, %cst {dimension_numbers = #tpu.dot_dimension_numbers<[1], [1], [0], [0], [0, 0, 1, 0], [], []>} : vector<32x14xf32>, vector<128x14xf32>, vector<32x128xf32> -> vector<32x128xf32>
    %c0_3 = arith.constant 0 : index
    %c0_4 = arith.constant 0 : index
    %3 = vector.load %arg3[%c0_3, %c0_4] : memref<32x1xf32, #tpu.memory_space<vmem>>, vector<32x1xf32>
    %4 = vector.broadcast %3 : vector<32x1xf32> to vector<32x128xf32>
    %5 = arith.addf %2, %4 : vector<32x128xf32>
    %cst_5 = arith.constant 0.000000e+00 : f32
    %6 = vector.broadcast %cst_5 : f32 to vector<32x128xf32>
    %7 = arith.maximumf %5, %6 : vector<32x128xf32>
    %c0_6 = arith.constant 0 : index
    %c0_7 = arith.constant 0 : index
    %8 = vector.load %arg4[%c0_6, %c0_7] : memref<32x32xf32, #tpu.memory_space<vmem>>, vector<32x32xf32>
    %cst_8 = arith.constant dense<0.000000e+00> : vector<32x128xf32>
    %9 = tpu.matmul %8, %7, %cst_8 {dimension_numbers = #tpu.dot_dimension_numbers<[1], [0], [0], [1], [0, 0, 1, 1], [], []>} : vector<32x32xf32>, vector<32x128xf32>, vector<32x128xf32> -> vector<32x128xf32>
    %c0_9 = arith.constant 0 : index
    %c0_10 = arith.constant 0 : index
    %10 = vector.load %arg5[%c0_9, %c0_10] : memref<32x1xf32, #tpu.memory_space<vmem>>, vector<32x1xf32>
    %11 = vector.broadcast %10 : vector<32x1xf32> to vector<32x128xf32>
    %12 = arith.addf %9, %11 : vector<32x128xf32>
    %cst_11 = arith.constant 0.000000e+00 : f32
    %13 = vector.broadcast %cst_11 : f32 to vector<32x128xf32>
    %14 = arith.maximumf %12, %13 : vector<32x128xf32>
    %c0_12 = arith.constant 0 : index
    %c0_13 = arith.constant 0 : index
    %15 = vector.load %arg6[%c0_12, %c0_13] : memref<32x32xf32, #tpu.memory_space<vmem>>, vector<32x32xf32>
    %cst_14 = arith.constant dense<0.000000e+00> : vector<32x128xf32>
    %16 = tpu.matmul %15, %14, %cst_14 {dimension_numbers = #tpu.dot_dimension_numbers<[1], [0], [0], [1], [0, 0, 1, 1], [], []>} : vector<32x32xf32>, vector<32x128xf32>, vector<32x128xf32> -> vector<32x128xf32>
    %c0_15 = arith.constant 0 : index
    %c0_16 = arith.constant 0 : index
    %17 = vector.load %arg7[%c0_15, %c0_16] : memref<32x1xf32, #tpu.memory_space<vmem>>, vector<32x1xf32>
    %18 = vector.broadcast %17 : vector<32x1xf32> to vector<32x128xf32>
    %19 = arith.addf %16, %18 : vector<32x128xf32>
    %cst_17 = arith.constant 0.000000e+00 : f32
    %20 = vector.broadcast %cst_17 : f32 to vector<32x128xf32>
    %21 = arith.maximumf %19, %20 : vector<32x128xf32>
    %c0_18 = arith.constant 0 : index
    %c0_19 = arith.constant 0 : index
    %22 = vector.load %arg8[%c0_18, %c0_19] : memref<1x32xf32, #tpu.memory_space<vmem>>, vector<1x32xf32>
    %cst_20 = arith.constant dense<0.000000e+00> : vector<1x128xf32>
    %23 = tpu.matmul %22, %21, %cst_20 {dimension_numbers = #tpu.dot_dimension_numbers<[1], [0], [0], [1], [0, 0, 1, 1], [], []>} : vector<1x32xf32>, vector<32x128xf32>, vector<1x128xf32> -> vector<1x128xf32>
    %c0_21 = arith.constant 0 : index
    %c0_22 = arith.constant 0 : index
    %24 = vector.load %arg9[%c0_21, %c0_22] : memref<1x1xf32, #tpu.memory_space<vmem>>, vector<1x1xf32>
    %25 = vector.broadcast %24 : vector<1x1xf32> to vector<1x128xf32>
    %26 = arith.addf %23, %25 : vector<1x128xf32>
    %c0_23 = arith.constant 0 : index
    %c0_24 = arith.constant 0 : index
    %27 = vector.load %arg10[%c0_23, %c0_24] : memref<1x128xf32, #tpu.memory_space<vmem>>, vector<1x128xf32>
    tpu.vector_store %arg10[%c0_23, %c0_24], %26 {strides = array<i32>} : memref<1x128xf32, #tpu.memory_space<vmem>>, vector<1x128xf32>,
    return
  }
  func.func @transform_0(%arg0: i32) -> (i32, i32) {
    %c0_i32 = arith.constant 0 : i32
    %c0_i32_0 = arith.constant 0 : i32
    return %arg0, %c0_i32 : i32, i32
  }
  func.func @transform_1(%arg0: i32) -> (i32, i32) {
    %c0_i32 = arith.constant 0 : i32
    %c0_i32_0 = arith.constant 0 : i32
    %c0_i32_1 = arith.constant 0 : i32
    return %c0_i32, %c0_i32_0 : i32, i32
  }
  func.func @transform_2(%arg0: i32) -> (i32, i32) {
    %c0_i32 = arith.constant 0 : i32
    %c0_i32_0 = arith.constant 0 : i32
    %c0_i32_1 = arith.constant 0 : i32
    return %c0_i32, %c0_i32_0 : i32, i32
  }
  func.func @transform_3(%arg0: i32) -> (i32, i32) {
    %c0_i32 = arith.constant 0 : i32
    %c0_i32_0 = arith.constant 0 : i32
    %c0_i32_1 = arith.constant 0 : i32
    return %c0_i32, %c0_i32_0 : i32, i32
  }
  func.func @transform_4(%arg0: i32) -> (i32, i32) {
    %c0_i32 = arith.constant 0 : i32
    %c0_i32_0 = arith.constant 0 : i32
    %c0_i32_1 = arith.constant 0 : i32
    return %c0_i32, %c0_i32_0 : i32, i32
  }
  func.func @transform_5(%arg0: i32) -> (i32, i32) {
    %c0_i32 = arith.constant 0 : i32
    %c0_i32_0 = arith.constant 0 : i32
    %c0_i32_1 = arith.constant 0 : i32
    return %c0_i32, %c0_i32_0 : i32, i32
  }
  func.func @transform_6(%arg0: i32) -> (i32, i32) {
    %c0_i32 = arith.constant 0 : i32
    %c0_i32_0 = arith.constant 0 : i32
    %c0_i32_1 = arith.constant 0 : i32
    return %c0_i32, %c0_i32_0 : i32, i32
  }
  func.func @transform_7(%arg0: i32) -> (i32, i32) {
    %c0_i32 = arith.constant 0 : i32
    %c0_i32_0 = arith.constant 0 : i32
    %c0_i32_1 = arith.constant 0 : i32
    return %c0_i32, %c0_i32_0 : i32, i32
  }
  func.func @transform_8(%arg0: i32) -> (i32, i32) {
    %c0_i32 = arith.constant 0 : i32
    %c0_i32_0 = arith.constant 0 : i32
    %c0_i32_1 = arith.constant 0 : i32
    return %c0_i32, %c0_i32_0 : i32, i32
  }
  func.func @transform_9(%arg0: i32) -> (i32, i32) {
    %c0_i32 = arith.constant 0 : i32
    %c0_i32_0 = arith.constant 0 : i32
    return %c0_i32, %arg0 : i32, i32
  }
}

</mosaic_0001>

<llo_original>
// kernel: tpu_custom_call.1
$region0: #{tpu_custom_call.1}
  #allocation0 [shape = 'u32[]', space=smem, size = 0x4, offset = 0x4, fixed_abs, tag = 'smem constant byte address 0x4 - core index']
  #allocation1 [shape = 'u32[144,128]{1,0:T(1,128)}', space=vmem, size = 0x12000, scoped, tag = 'internal scratch']
  #allocation2 [shape = 'f32[1,1]{1,0:T(1,128)S(1)}', space=vmem, size = 0x200, scoped, tag = 'scoped memory for tpu_custom_call.1']
  %s0 = inlined_call_operand.vmem [shape: f32[128,14], index: 0, kind: input, shape index: {}]
  %s1 = inlined_call_operand.vmem [shape: f32[32,14], index: 1, kind: input, shape index: {}]
  %s2 = inlined_call_operand.vmem [shape: f32[32,1], index: 2, kind: input, shape index: {}]
  %s3 = inlined_call_operand.vmem [shape: f32[32,32], index: 3, kind: input, shape index: {}]
  %s4 = inlined_call_operand.vmem [shape: f32[32,1], index: 4, kind: input, shape index: {}]
  %s5 = inlined_call_operand.vmem [shape: f32[32,32], index: 5, kind: input, shape index: {}]
  %s6 = inlined_call_operand.vmem [shape: f32[32,1], index: 6, kind: input, shape index: {}]
  %s7 = inlined_call_operand.vmem [shape: f32[1,32], index: 7, kind: input, shape index: {}]
  %s8 = inlined_call_operand.<no memory space> [shape: f32[1,1], index: 8, kind: input, shape index: {}]
  %s9 = inlined_call_operand.hbm [shape: f32[1,128], index: 9, kind: output, shape index: {}]
  %s10 = sld [smem:[#allocation0]]
  $region46: #{tpu_custom_call.1} parent=0
    _
  %s12 = ssub.s32 1, %s10
  %s13 = scalar_select 0, %s12, %s10
  %v14 = vstv %s8
  %15 = vst [vmem:[#allocation2] sm:$0x1] %v14
  $region1: #{tpu_custom_call.1} parent=0
    #allocation3 [shape = 'u8[512]{0}', space=vmem, size = 0x400, scoped, tag = 'output window, operand 0, single buffered']
    #allocation4 [shape = 's32[1]{0}', space=sflag, size = 0x4, scoped, tag = 'scoped memory for tpu_custom_call.1']
    %16 = vsyncpa [#allocation4], 0
    // Predicated region
    $region2: #{tpu_custom_call.1} parent=1 // pred_check
      _
    $region3: #{tpu_custom_call.1} parent=1 // pred_check_branch
      %18 = sbr.rel (0) target = $region5
    $region4: #{tpu_custom_call.1} parent=1 // pred_region
      _
    $region5: #{tpu_custom_call.1} parent=1 // pred_fallthru
      _
    // Predicated region
    $region6: #{tpu_custom_call.1} parent=1 // pred_check
      _
    $region7: #{tpu_custom_call.1} parent=1 // pred_check_branch
      %20 = sbr.rel (0) target = $region9
    $region8: #{tpu_custom_call.1} parent=1 // pred_region
      _
    $region9: #{tpu_custom_call.1} parent=1 // pred_fallthru
      _
    // Predicated region
    $region10: #{tpu_custom_call.1} parent=1 // pred_check
      _
    $region11: #{tpu_custom_call.1} parent=1 // pred_check_branch
      %22 = sbr.rel (0) target = $region13
    $region12: #{tpu_custom_call.1} parent=1 // pred_region
      _
    $region13: #{tpu_custom_call.1} parent=1 // pred_fallthru
      _
    // Predicated region
    $region14: #{tpu_custom_call.1} parent=1 // pred_check
      _
    $region15: #{tpu_custom_call.1} parent=1 // pred_check_branch
      %24 = sbr.rel (0) target = $region17
    $region16: #{tpu_custom_call.1} parent=1 // pred_region
      _
    $region17: #{tpu_custom_call.1} parent=1 // pred_fallthru
      _
    // Predicated region
    $region18: #{tpu_custom_call.1} parent=1 // pred_check
      _
    $region19: #{tpu_custom_call.1} parent=1 // pred_check_branch
      %26 = sbr.rel (0) target = $region21
    $region20: #{tpu_custom_call.1} parent=1 // pred_region
      _
    $region21: #{tpu_custom_call.1} parent=1 // pred_fallthru
      _
    // Predicated region
    $region22: #{tpu_custom_call.1} parent=1 // pred_check
      _
    $region23: #{tpu_custom_call.1} parent=1 // pred_check_branch
      %28 = sbr.rel (0) target = $region25
    $region24: #{tpu_custom_call.1} parent=1 // pred_region
      _
    $region25: #{tpu_custom_call.1} parent=1 // pred_fallthru
      _
    // Predicated region
    $region26: #{tpu_custom_call.1} parent=1 // pred_check
      _
    $region27: #{tpu_custom_call.1} parent=1 // pred_check_branch
      %30 = sbr.rel (0) target = $region29
    $region28: #{tpu_custom_call.1} parent=1 // pred_region
      _
    $region29: #{tpu_custom_call.1} parent=1 // pred_fallthru
      _
    // Predicated region
    $region30: #{tpu_custom_call.1} parent=1 // pred_check
      _
    $region31: #{tpu_custom_call.1} parent=1 // pred_check_branch
      %32 = sbr.rel (0) target = $region33
    $region32: #{tpu_custom_call.1} parent=1 // pred_region
      _
    $region33: #{tpu_custom_call.1} parent=1 // pred_fallthru
      _
    // Predicated region
    $region34: #{tpu_custom_call.1} parent=1 // pred_check
      _
    $region35: #{tpu_custom_call.1} parent=1 // pred_check_branch
      %34 = sbr.rel (0) target = $region37
    $region36: #{tpu_custom_call.1} parent=1 // pred_region
      _
    $region37: #{tpu_custom_call.1} parent=1 // pred_fallthru
      _
    %v35 = vld [vmem:[%s1] sm:$0xff]
    %v36 = vld [vmem:[%s1 + $0x8] sm:$0xff]
    %v37 = vld [vmem:[%s1 + $0x10] sm:$0xff]
    %v38 = vld [vmem:[%s1 + $0x18] sm:$0xff]
    %v39 = vld [vmem:[%s0] sm:$0xff]
    %v40 = vld [vmem:[%s0 + $0x8] sm:$0xff]
    %v41 = vld [vmem:[%s0 + $0x10] sm:$0xff]
    %v42 = vld [vmem:[%s0 + $0x18] sm:$0xff]
    %v43 = vld [vmem:[%s0 + $0x20] sm:$0xff]
    %v44 = vld [vmem:[%s0 + $0x28] sm:$0xff]
    %v45 = vld [vmem:[%s0 + $0x30] sm:$0xff]
    %v46 = vld [vmem:[%s0 + $0x38] sm:$0xff]
    %v47 = vld [vmem:[%s0 + $0x40] sm:$0xff]
    %v48 = vld [vmem:[%s0 + $0x48] sm:$0xff]
    %v49 = vld [vmem:[%s0 + $0x50] sm:$0xff]
    %v50 = vld [vmem:[%s0 + $0x58] sm:$0xff]
    %v51 = vld [vmem:[%s0 + $0x60] sm:$0xff]
    %v52 = vld [vmem:[%s0 + $0x68] sm:$0xff]
    %v53 = vld [vmem:[%s0 + $0x70] sm:$0xff]
    %v54 = vld [vmem:[%s0 + $0x78] sm:$0xff]
    %v55 = vld [vmem:[%s2] sm:$0xff]
    %v56 = vld [vmem:[%s2 + $0x8] sm:$0xff]
    %v57 = vld [vmem:[%s2 + $0x10] sm:$0xff]
    %v58 = vld [vmem:[%s2 + $0x18] sm:$0xff]
    %60 = vset.pattern.permute.xlu0 0
    %61 = vperm.xlu0 %60, %v55
    %v62 = vpop.permute.xlu0 %61
    %65 = vset.pattern.permute.xlu0 0
    %66 = vperm.xlu0 %65, %v56
    %v67 = vpop.permute.xlu0 %66
    %70 = vset.pattern.permute.xlu0 0
    %71 = vperm.xlu0 %70, %v57
    %v72 = vpop.permute.xlu0 %71
    %75 = vset.pattern.permute.xlu0 0
    %76 = vperm.xlu0 %75, %v58
    %v77 = vpop.permute.xlu0 %76
    %vm79 = vcmask 113664
    %v81 = vsel %vm79, %v35, 0
    %v84 = vsel %vm79, %v36, 0
    %v87 = vsel %vm79, %v37, 0
    %v90 = vsel %vm79, %v38, 0
    %v93 = vsel %vm79, %v39, 0
    %v96 = vsel %vm79, %v40, 0
    %v99 = vsel %vm79, %v41, 0
    %v102 = vsel %vm79, %v42, 0
    %v105 = vsel %vm79, %v43, 0
    %v108 = vsel %vm79, %v44, 0
    %v111 = vsel %vm79, %v45, 0
    %v114 = vsel %vm79, %v46, 0
    %v117 = vsel %vm79, %v47, 0
    %v120 = vsel %vm79, %v48, 0
    %v123 = vsel %vm79, %v49, 0
    %v126 = vsel %vm79, %v50, 0
    %v129 = vsel %vm79, %v51, 0
    %v132 = vsel %vm79, %v52, 0
    %v135 = vsel %vm79, %v53, 0
    %v138 = vsel %vm79, %v54, 0
    %140 = vmatprep.subr.mxu0 0.0
    %141 = vmatpush1.xpose.msra.mxu0 %v93
    %142 = vmatprep.subr.mxu0 0.0
    %143 = vmatpush1.xpose.msra.mxu0 %v96
    %144 = vmatprep.subr.mxu0 0.0
    %145 = vmatpush1.xpose.msra.mxu0 %v99
    %146 = vmatprep.subr.mxu0 0.0
    %147 = vmatpush1.xpose.msra.mxu0 %v102
    %148 = vmatprep.subr.mxu0 0.0
    %149 = vmatpush1.xpose.msra.mxu0 %v105
    %150 = vmatprep.subr.mxu0 0.0
    %151 = vmatpush1.xpose.msra.mxu0 %v108
    %152 = vmatprep.subr.mxu0 0.0
    %153 = vmatpush1.xpose.msra.mxu0 %v111
    %154 = vmatprep.subr.mxu0 0.0
    %155 = vmatpush1.xpose.msra.mxu0 %v114
    %156 = vmatprep.subr.mxu0 0.0
    %157 = vmatpush1.xpose.msra.mxu0 %v117
    %158 = vmatprep.subr.mxu0 0.0
    %159 = vmatpush1.xpose.msra.mxu0 %v120
    %160 = vmatprep.subr.mxu0 0.0
    %161 = vmatpush1.xpose.msra.mxu0 %v123
    %162 = vmatprep.subr.mxu0 0.0
    %163 = vmatpush1.xpose.msra.mxu0 %v126
    %164 = vmatprep.subr.mxu0 0.0
    %165 = vmatpush1.xpose.msra.mxu0 %v129
    %166 = vmatprep.subr.mxu0 0.0
    %167 = vmatpush1.xpose.msra.mxu0 %v132
    %168 = vmatprep.subr.mxu0 0.0
    %169 = vmatpush1.xpose.msra.mxu0 %v135
    %170 = vmatprep.subr.mxu0 0.0
    %171 = vmatpush1.xpose.msra.mxu0 %v138
    %172 = vmatprep.subr.mxu0 0.0
    %173 = vmatpush1.xpose.msra.mxu0 0.0
    %174 = vmatprep.subr.mxu0 0.0
    %175 = vmatpush1.xpose.msra.mxu0 0.0
    %176 = vmatprep.subr.mxu0 0.0
    %177 = vmatpush1.xpose.msra.mxu0 0.0
    %178 = vmatprep.subr.mxu0 0.0
    %179 = vmatpush1.xpose.msra.mxu0 0.0
    %180 = vmatprep.subr.mxu0 0.0
    %181 = vmatpush1.xpose.msra.mxu0 0.0
    %182 = vmatprep.subr.mxu0 0.0
    %183 = vmatpush1.xpose.msra.mxu0 0.0
    %184 = vmatprep.subr.mxu0 0.0
    %185 = vmatpush1.xpose.msra.mxu0 0.0
    %186 = vmatprep.subr.mxu0 0.0
    %187 = vmatpush1.xpose.msra.mxu0 0.0
    %188 = vmatprep.subr.mxu0 0.0
    %189 = vmatpush1.xpose.msra.mxu0 0.0
    %190 = vmatprep.subr.mxu0 0.0
    %191 = vmatpush1.xpose.msra.mxu0 0.0
    %192 = vmatprep.subr.mxu0 0.0
    %193 = vmatpush1.xpose.msra.mxu0 0.0
    %194 = vmatprep.subr.mxu0 0.0
    %195 = vmatpush1.xpose.msra.mxu0 0.0
    %196 = vmatprep.subr.mxu0 0.0
    %197 = vmatpush1.xpose.msra.mxu0 0.0
    %198 = vmatprep.subr.mxu0 0.0
    %199 = vmatpush1.xpose.msra.mxu0 0.0
    %200 = vmatprep.subr.mxu0 0.0
    %201 = vmatpush1.xpose.msra.mxu0 0.0
    %202 = vmatprep.subr.mxu0 0.0
    %203 = vmatpush1.xpose.msra.mxu0 0.0
    %204 = vmatprep.mubr.f32.mxu0 0.0
    %205 = vmatmul.mubr.f32.gmra.mrb[0].mxu0 %v81
    %v206 = vpop.f32.mrb[0].mxu0
    %v207 = vadd.f32 %v62, %v206
    %v208 = vpop.f32.mrb[0].mxu0
    %209 = vmatprep.mubr.f32.mxu0 0.0
    %210 = vmatmul.mubr.f32.gmra.mrb[0].mxu0 %v84
    %v211 = vpop.f32.mrb[0].mxu0
    %v212 = vadd.f32 %v67, %v211
    %v213 = vpop.f32.mrb[0].mxu0
    %214 = vmatprep.mubr.f32.mxu0 0.0
    %215 = vmatmul.mubr.f32.gmra.mrb[0].mxu0 %v87
    %v216 = vpop.f32.mrb[0].mxu0
    %v217 = vadd.f32 %v72, %v216
    %v218 = vpop.f32.mrb[0].mxu0
    %219 = vmatprep.mubr.f32.mxu0 0.0
    %220 = vmatmul.mubr.f32.gmra.mrb[0].mxu0 %v90
    %v221 = vpop.f32.mrb[0].mxu0
    %v222 = vadd.f32 %v77, %v221
    %v223 = vpop.f32.mrb[0].mxu0
    %224 = vdwg.mxu0
    %v225 = vmax.f32 %v207, 0.0
    %v226 = vmax.f32 %v212, 0.0
    %v227 = vmax.f32 %v217, 0.0
    %v228 = vmax.f32 %v222, 0.0
    %v229 = vld [vmem:[%s3] sm:$0xff]
    %v230 = vld [vmem:[%s3 + $0x8] sm:$0xff]
    %v231 = vld [vmem:[%s3 + $0x10] sm:$0xff]
    %v232 = vld [vmem:[%s3 + $0x18] sm:$0xff]
    %v233 = vld [vmem:[%s4] sm:$0xff]
    %v234 = vld [vmem:[%s4 + $0x8] sm:$0xff]
    %v235 = vld [vmem:[%s4 + $0x10] sm:$0xff]
    %v236 = vld [vmem:[%s4 + $0x18] sm:$0xff]
    %238 = vset.pattern.permute.xlu0 0
    %239 = vperm.xlu0 %238, %v233
    %v240 = vpop.permute.xlu0 %239
    %243 = vset.pattern.permute.xlu0 0
    %244 = vperm.xlu0 %243, %v234
    %v245 = vpop.permute.xlu0 %244
    %248 = vset.pattern.permute.xlu0 0
    %249 = vperm.xlu0 %248, %v235
    %v250 = vpop.permute.xlu0 %249
    %253 = vset.pattern.permute.xlu0 0
    %254 = vperm.xlu0 %253, %v236
    %v255 = vpop.permute.xlu0 %254
    %vm257 = vcmask 261120
    %v259 = vsel %vm257, %v229, 0
    %v262 = vsel %vm257, %v230, 0
    %v265 = vsel %vm257, %v231, 0
    %v268 = vsel %vm257, %v232, 0
    %270 = vmatprep.subr.mxu0 0.0
    %271 = vmatpush1.msra.mxu0 %v225
    %272 = vmatprep.subr.mxu0 0.0
    %273 = vmatpush1.msra.mxu0 %v226
    %274 = vmatprep.subr.mxu0 0.0
    %275 = vmatpush1.msra.mxu0 %v227
    %276 = vmatprep.subr.mxu0 0.0
    %277 = vmatpush1.msra.mxu0 %v228
    %278 = vmatprep.subr.mxu0 0.0
    %279 = vmatpush1.msra.mxu0 0.0
    %280 = vmatprep.subr.mxu0 0.0
    %281 = vmatpush1.msra.mxu0 0.0
    %282 = vmatprep.subr.mxu0 0.0
    %283 = vmatpush1.msra.mxu0 0.0
    %284 = vmatprep.subr.mxu0 0.0
    %285 = vmatpush1.msra.mxu0 0.0
    %286 = vmatprep.subr.mxu0 0.0
    %287 = vmatpush1.msra.mxu0 0.0
    %288 = vmatprep.subr.mxu0 0.0
    %289 = vmatpush1.msra.mxu0 0.0
    %290 = vmatprep.subr.mxu0 0.0
    %291 = vmatpush1.msra.mxu0 0.0
    %292 = vmatprep.subr.mxu0 0.0
    %293 = vmatpush1.msra.mxu0 0.0
    %294 = vmatprep.subr.mxu0 0.0
    %295 = vmatpush1.msra.mxu0 0.0
    %296 = vmatprep.subr.mxu0 0.0
    %297 = vmatpush1.msra.mxu0 0.0
    %298 = vmatprep.subr.mxu0 0.0
    %299 = vmatpush1.msra.mxu0 0.0
    %300 = vmatprep.subr.mxu0 0.0
    %301 = vmatpush1.msra.mxu0 0.0
    %302 = vmatprep.subr.mxu0 0.0
    %303 = vmatpush1.msra.mxu0 0.0
    %304 = vmatprep.subr.mxu0 0.0
    %305 = vmatpush1.msra.mxu0 0.0
    %306 = vmatprep.subr.mxu0 0.0
    %307 = vmatpush1.msra.mxu0 0.0
    %308 = vmatprep.subr.mxu0 0.0
    %309 = vmatpush1.msra.mxu0 0.0
    %310 = vmatprep.subr.mxu0 0.0
    %311 = vmatpush1.msra.mxu0 0.0
    %312 = vmatprep.subr.mxu0 0.0
    %313 = vmatpush1.msra.mxu0 0.0
    %314 = vmatprep.subr.mxu0 0.0
    %315 = vmatpush1.msra.mxu0 0.0
    %316 = vmatprep.subr.mxu0 0.0
    %317 = vmatpush1.msra.mxu0 0.0
    %318 = vmatprep.subr.mxu0 0.0
    %319 = vmatpush1.msra.mxu0 0.0
    %320 = vmatprep.subr.mxu0 0.0
    %321 = vmatpush1.msra.mxu0 0.0
    %322 = vmatprep.subr.mxu0 0.0
    %323 = vmatpush1.msra.mxu0 0.0
    %324 = vmatprep.subr.mxu0 0.0
    %325 = vmatpush1.msra.mxu0 0.0
    %326 = vmatprep.subr.mxu0 0.0
    %327 = vmatpush1.msra.mxu0 0.0
    %328 = vmatprep.subr.mxu0 0.0
    %329 = vmatpush1.msra.mxu0 0.0
    %330 = vmatprep.subr.mxu0 0.0
    %331 = vmatpush1.msra.mxu0 0.0
    %332 = vmatprep.subr.mxu0 0.0
    %333 = vmatpush1.msra.mxu0 0.0
    %334 = vmatprep.mubr.f32.mxu0 0.0
    %335 = vmatmul.mubr.f32.gmra.mrb[0].mxu0 %v259
    %v336 = vpop.f32.mrb[0].mxu0
    %v337 = vadd.f32 %v240, %v336
    %v338 = vpop.f32.mrb[0].mxu0
    %339 = vmatprep.mubr.f32.mxu0 0.0
    %340 = vmatmul.mubr.f32.gmra.mrb[0].mxu0 %v262
    %v341 = vpop.f32.mrb[0].mxu0
    %v342 = vadd.f32 %v245, %v341
    %v343 = vpop.f32.mrb[0].mxu0
    %344 = vmatprep.mubr.f32.mxu0 0.0
    %345 = vmatmul.mubr.f32.gmra.mrb[0].mxu0 %v265
    %v346 = vpop.f32.mrb[0].mxu0
    %v347 = vadd.f32 %v250, %v346
    %v348 = vpop.f32.mrb[0].mxu0
    %349 = vmatprep.mubr.f32.mxu0 0.0
    %350 = vmatmul.mubr.f32.gmra.mrb[0].mxu0 %v268
    %v351 = vpop.f32.mrb[0].mxu0
    %v352 = vadd.f32 %v255, %v351
    %v353 = vpop.f32.mrb[0].mxu0
    %354 = vdwg.mxu0
    %v355 = vmax.f32 %v337, 0.0
    %v356 = vmax.f32 %v342, 0.0
    %v357 = vmax.f32 %v347, 0.0
    %v358 = vmax.f32 %v352, 0.0
    %v359 = vld [vmem:[%s5] sm:$0xff]
    %v360 = vld [vmem:[%s5 + $0x8] sm:$0xff]
    %v361 = vld [vmem:[%s5 + $0x10] sm:$0xff]
    %v362 = vld [vmem:[%s5 + $0x18] sm:$0xff]
    %v363 = vld [vmem:[%s6] sm:$0xff]
    %v364 = vld [vmem:[%s6 + $0x8] sm:$0xff]
    %v365 = vld [vmem:[%s6 + $0x10] sm:$0xff]
    %v366 = vld [vmem:[%s6 + $0x18] sm:$0xff]
    %368 = vset.pattern.permute.xlu0 0
    %369 = vperm.xlu0 %368, %v363
    %v370 = vpop.permute.xlu0 %369
    %373 = vset.pattern.permute.xlu0 0
    %374 = vperm.xlu0 %373, %v364
    %v375 = vpop.permute.xlu0 %374
    %378 = vset.pattern.permute.xlu0 0
    %379 = vperm.xlu0 %378, %v365
    %v380 = vpop.permute.xlu0 %379
    %383 = vset.pattern.permute.xlu0 0
    %384 = vperm.xlu0 %383, %v366
    %v385 = vpop.permute.xlu0 %384
    %v388 = vsel %vm257, %v359, 0
    %v391 = vsel %vm257, %v360, 0
    %v394 = vsel %vm257, %v361, 0
    %v397 = vsel %vm257, %v362, 0
    %399 = vmatprep.subr.mxu0 0.0
    %400 = vmatpush1.msra.mxu0 %v355
    %401 = vmatprep.subr.mxu0 0.0
    %402 = vmatpush1.msra.mxu0 %v356
    %403 = vmatprep.subr.mxu0 0.0
    %404 = vmatpush1.msra.mxu0 %v357
    %405 = vmatprep.subr.mxu0 0.0
    %406 = vmatpush1.msra.mxu0 %v358
    %407 = vmatprep.subr.mxu0 0.0
    %408 = vmatpush1.msra.mxu0 0.0
    %409 = vmatprep.subr.mxu0 0.0
    %410 = vmatpush1.msra.mxu0 0.0
    %411 = vmatprep.subr.mxu0 0.0
    %412 = vmatpush1.msra.mxu0 0.0
    %413 = vmatprep.subr.mxu0 0.0
    %414 = vmatpush1.msra.mxu0 0.0
    %415 = vmatprep.subr.mxu0 0.0
    %416 = vmatpush1.msra.mxu0 0.0
    %417 = vmatprep.subr.mxu0 0.0
    %418 = vmatpush1.msra.mxu0 0.0
    %419 = vmatprep.subr.mxu0 0.0
    %420 = vmatpush1.msra.mxu0 0.0
    %421 = vmatprep.subr.mxu0 0.0
    %422 = vmatpush1.msra.mxu0 0.0
    %423 = vmatprep.subr.mxu0 0.0
    %424 = vmatpush1.msra.mxu0 0.0
    %425 = vmatprep.subr.mxu0 0.0
    %426 = vmatpush1.msra.mxu0 0.0
    %427 = vmatprep.subr.mxu0 0.0
    %428 = vmatpush1.msra.mxu0 0.0
    %429 = vmatprep.subr.mxu0 0.0
    %430 = vmatpush1.msra.mxu0 0.0
    %431 = vmatprep.subr.mxu0 0.0
    %432 = vmatpush1.msra.mxu0 0.0
    %433 = vmatprep.subr.mxu0 0.0
    %434 = vmatpush1.msra.mxu0 0.0
    %435 = vmatprep.subr.mxu0 0.0
    %436 = vmatpush1.msra.mxu0 0.0
    %437 = vmatprep.subr.mxu0 0.0
    %438 = vmatpush1.msra.mxu0 0.0
    %439 = vmatprep.subr.mxu0 0.0
    %440 = vmatpush1.msra.mxu0 0.0
    %441 = vmatprep.subr.mxu0 0.0
    %442 = vmatpush1.msra.mxu0 0.0
    %443 = vmatprep.subr.mxu0 0.0
    %444 = vmatpush1.msra.mxu0 0.0
    %445 = vmatprep.subr.mxu0 0.0
    %446 = vmatpush1.msra.mxu0 0.0
    %447 = vmatprep.subr.mxu0 0.0
    %448 = vmatpush1.msra.mxu0 0.0
    %449 = vmatprep.subr.mxu0 0.0
    %450 = vmatpush1.msra.mxu0 0.0
    %451 = vmatprep.subr.mxu0 0.0
    %452 = vmatpush1.msra.mxu0 0.0
    %453 = vmatprep.subr.mxu0 0.0
    %454 = vmatpush1.msra.mxu0 0.0
    %455 = vmatprep.subr.mxu0 0.0
    %456 = vmatpush1.msra.mxu0 0.0
    %457 = vmatprep.subr.mxu0 0.0
    %458 = vmatpush1.msra.mxu0 0.0
    %459 = vmatprep.subr.mxu0 0.0
    %460 = vmatpush1.msra.mxu0 0.0
    %461 = vmatprep.subr.mxu0 0.0
    %462 = vmatpush1.msra.mxu0 0.0
    %463 = vmatprep.mubr.f32.mxu0 0.0
    %464 = vmatmul.mubr.f32.gmra.mrb[0].mxu0 %v388
    %v465 = vpop.f32.mrb[0].mxu0
    %v466 = vadd.f32 %v370, %v465
    %v467 = vpop.f32.mrb[0].mxu0
    %468 = vmatprep.mubr.f32.mxu0 0.0
    %469 = vmatmul.mubr.f32.gmra.mrb[0].mxu0 %v391
    %v470 = vpop.f32.mrb[0].mxu0
    %v471 = vadd.f32 %v375, %v470
    %v472 = vpop.f32.mrb[0].mxu0
    %473 = vmatprep.mubr.f32.mxu0 0.0
    %474 = vmatmul.mubr.f32.gmra.mrb[0].mxu0 %v394
    %v475 = vpop.f32.mrb[0].mxu0
    %v476 = vadd.f32 %v380, %v475
    %v477 = vpop.f32.mrb[0].mxu0
    %478 = vmatprep.mubr.f32.mxu0 0.0
    %479 = vmatmul.mubr.f32.gmra.mrb[0].mxu0 %v397
    %v480 = vpop.f32.mrb[0].mxu0
    %v481 = vadd.f32 %v385, %v480
    %v482 = vpop.f32.mrb[0].mxu0
    %483 = vdwg.mxu0
    %v484 = vmax.f32 %v466, 0.0
    %v485 = vmax.f32 %v471, 0.0
    %v486 = vmax.f32 %v476, 0.0
    %v487 = vmax.f32 %v481, 0.0
    %v488 = vld [vmem:[%s7] sm:$0x1]
    %v489 = vld [vmem:[#allocation2] sm:$0x1]
    %491 = vset.pattern.permute.xlu0 0
    %492 = vperm.xlu0 %491, %v489
    %v493 = vpop.permute.xlu0 %492
    %v495 = vlaneseq
    %v496 = vshrl.u32 %v495, 7
    %v497 = vsub.s32 0, %v496
    %v498 = vrot.slane %v493, %v497
    %v500 = vsel %vm257, %v488, 0
    %502 = vmatprep.subr.mxu0 0.0
    %503 = vmatpush1.msra.mxu0 %v484
    %504 = vmatprep.subr.mxu0 0.0
    %505 = vmatpush1.msra.mxu0 %v485
    %506 = vmatprep.subr.mxu0 0.0
    %507 = vmatpush1.msra.mxu0 %v486
    %508 = vmatprep.subr.mxu0 0.0
    %509 = vmatpush1.msra.mxu0 %v487
    %510 = vmatprep.subr.mxu0 0.0
    %511 = vmatpush1.msra.mxu0 0.0
    %512 = vmatprep.subr.mxu0 0.0
    %513 = vmatpush1.msra.mxu0 0.0
    %514 = vmatprep.subr.mxu0 0.0
    %515 = vmatpush1.msra.mxu0 0.0
    %516 = vmatprep.subr.mxu0 0.0
    %517 = vmatpush1.msra.mxu0 0.0
    %518 = vmatprep.subr.mxu0 0.0
    %519 = vmatpush1.msra.mxu0 0.0
    %520 = vmatprep.subr.mxu0 0.0
    %521 = vmatpush1.msra.mxu0 0.0
    %522 = vmatprep.subr.mxu0 0.0
    %523 = vmatpush1.msra.mxu0 0.0
    %524 = vmatprep.subr.mxu0 0.0
    %525 = vmatpush1.msra.mxu0 0.0
    %526 = vmatprep.subr.mxu0 0.0
    %527 = vmatpush1.msra.mxu0 0.0
    %528 = vmatprep.subr.mxu0 0.0
    %529 = vmatpush1.msra.mxu0 0.0
    %530 = vmatprep.subr.mxu0 0.0
    %531 = vmatpush1.msra.mxu0 0.0
    %532 = vmatprep.subr.mxu0 0.0
    %533 = vmatpush1.msra.mxu0 0.0
    %534 = vmatprep.subr.mxu0 0.0
    %535 = vmatpush1.msra.mxu0 0.0
    %536 = vmatprep.subr.mxu0 0.0
    %537 = vmatpush1.msra.mxu0 0.0
    %538 = vmatprep.subr.mxu0 0.0
    %539 = vmatpush1.msra.mxu0 0.0
    %540 = vmatprep.subr.mxu0 0.0
    %541 = vmatpush1.msra.mxu0 0.0
    %542 = vmatprep.subr.mxu0 0.0
    %543 = vmatpush1.msra.mxu0 0.0
    %544 = vmatprep.subr.mxu0 0.0
    %545 = vmatpush1.msra.mxu0 0.0
    %546 = vmatprep.subr.mxu0 0.0
    %547 = vmatpush1.msra.mxu0 0.0
    %548 = vmatprep.subr.mxu0 0.0
    %549 = vmatpush1.msra.mxu0 0.0
    %550 = vmatprep.subr.mxu0 0.0
    %551 = vmatpush1.msra.mxu0 0.0
    %552 = vmatprep.subr.mxu0 0.0
    %553 = vmatpush1.msra.mxu0 0.0
    %554 = vmatprep.subr.mxu0 0.0
    %555 = vmatpush1.msra.mxu0 0.0
    %556 = vmatprep.subr.mxu0 0.0
    %557 = vmatpush1.msra.mxu0 0.0
    %558 = vmatprep.subr.mxu0 0.0
    %559 = vmatpush1.msra.mxu0 0.0
    %560 = vmatprep.subr.mxu0 0.0
    %561 = vmatpush1.msra.mxu0 0.0
    %562 = vmatprep.subr.mxu0 0.0
    %563 = vmatpush1.msra.mxu0 0.0
    %564 = vmatprep.subr.mxu0 0.0
    %565 = vmatpush1.msra.mxu0 0.0
    %566 = vmatprep.mubr.f32.mxu0 0.0
    %567 = vmatmul.mubr.f32.gmra.mrb[0].mxu0 %v500
    %v568 = vpop.f32.mrb[0].mxu0
    %v569 = vadd.f32 %v498, %v568
    %v570 = vpop.f32.mrb[0].mxu0
    %571 = vdwg.mxu0
    %572 = vst [vmem:[#allocation3] sm:$0x1] %v569
    // Predicated region
    $region38: #{tpu_custom_call.1} parent=1 // pred_check
      _
    $region39: #{tpu_custom_call.1} parent=1 // pred_check_branch
      %574 = sbr.rel (0) target = $region41
    $region40: #{tpu_custom_call.1} parent=1 // pred_region
      %s576 = ssub.s32 16, 16
      %577 = vsyncadd [#allocation4], %s576
      %s579 = sshll.u32 [#allocation3], 4
      %s580 = int_to_ptr.vmem [resolvable:$true] %s579
      %582 = dma.vmem_to_hbm [thread:$0]  %s580, 16, %s9, [#allocation4]
    $region41: #{tpu_custom_call.1} parent=1 // pred_fallthru
      _
    // Predicated region
    $region42: #{tpu_custom_call.1} parent=1 // pred_check
      _
    $region43: #{tpu_custom_call.1} parent=1 // pred_check_branch
      %584 = sbr.rel (0) target = $region45
    $region44: #{tpu_custom_call.1} parent=1 // pred_region
      %585 = dma.done [#allocation4], 16
    $region45: #{tpu_custom_call.1} parent=1 // pred_fallthru
      _
    %586 = vsyncpa [#allocation4], 1

</llo_original>
